<compile_context>
chip_gen: v7x
topology: tpu7x:2x2x1
jax: 0.10.0
libtpu: 0.0.40
codegen_flags: <defaults>
</compile_context>

<pallas_src>
import jax
import jax.numpy as jnp
from jax.experimental import pallas as pl
from jax.experimental.pallas import tpu as pltpu

KSIZE = 4  # Conv1d kernel size of all four convs


def _round_up(a: int, m: int) -> int:
    return ((a + m - 1) // m) * m


def _cdiv(a: int, b: int) -> int:
    return -(-a // b)


def _make_kernel(out_len: int, shift_axis: int):
    """Folded 4-tap correlation over one tile.

    x_ref : VMEM tile of the (possibly transposed/padded) input slab.
    w_ref : SMEM (4,)  folded tap weights w_eff.
    b_ref : SMEM (1,)  folded bias b_eff (includes the +1.3).
    o_ref : VMEM tile; `out_len` along `shift_axis`, same extent elsewhere.
    """

    def kernel(x_ref, w_ref, b_ref, o_ref):
        xv = x_ref[...]  # single load; taps below are in-vreg shifts (XLU), not extra vld
        if shift_axis == 0:
            taps = [xv[k:k + out_len, :] for k in range(KSIZE)]
        else:
            taps = [xv[:, k:k + out_len] for k in range(KSIZE)]
        acc = w_ref[0] * taps[0] + b_ref[0]          # bias folded into tap 0
        for k in range(1, KSIZE):                    # static unroll: 3 more VPU passes
            acc = acc + w_ref[k] * taps[k]
        o_ref[...] = acc.astype(o_ref.dtype)

    return kernel


def _plan(extent: int, granule: int, per_unit_bytes: int, budget_bytes: int = 8 << 20):
    """Tile one axis of `extent` elements.

    Returns (padded_extent, tile, n_blocks) with:
      * tile a multiple of `granule`, sized so one in+out tile is ~budget_bytes
        (double-buffered that is ~2x, comfortably under the 48 MiB VMEM limit),
      * padded_extent an exact multiple of tile (no ragged last block),
      * >= 2 blocks whenever there is enough work, so both v7x TensorCores
        get a share under dimension_semantics=("parallel",).
    """
    padded = _round_up(max(extent, 1), granule)
    tile = (budget_bytes // max(per_unit_bytes, 1)) // granule * granule
    tile = max(granule, min(tile, padded))
    nblk = _cdiv(padded, tile)
    if nblk < 2 and padded >= 2 * granule:
        nblk = 2
    tile = _round_up(_cdiv(padded, nblk), granule)
    padded = nblk * tile
    return padded, tile, nblk


def nasty_adder(x, weights, biases):
    """x: (N, 1, L) f32. weights: (4, KSIZE) f32 (conv1..conv4, C_out=C_in=1
    squeezed). biases: (4,) f32. Returns (N, 1, L-3) f32 == NastyAdder.forward(x).
    """
    n, c, l = x.shape
    assert c == 1, "NastyAdder uses Conv1d(1, 1, 4): single input channel"
    assert l >= KSIZE, f"need L >= {KSIZE} for a valid conv, got L={l}"
    l_out = l - (KSIZE - 1)

    x2d = x[:, 0, :].astype(jnp.float32)  # (N, L)

    # Exact algebraic fold (linearity): out = 3*conv1 + 3*conv2 + conv3 + conv4 + 1.3
    coef = jnp.array([3.0, 3.0, 1.0, 1.0], jnp.float32)
    w_eff = jnp.sum(coef[:, None] * weights.astype(jnp.float32), axis=0)            # (KSIZE,)
    b_eff = (jnp.sum(coef * biases.astype(jnp.float32)) + jnp.float32(1.3)).reshape(1)

    compiler_params = pltpu.CompilerParams(
        dimension_semantics=("parallel",),      # independent tiles -> shard across TCs (v7x)
        vmem_limit_bytes=48 * 1024 * 1024,      # fits v7x's 64 MiB physical VMEM
    )
    smem_spec = pl.BlockSpec(memory_space=pltpu.MemorySpace.SMEM)

    if l < 256:
        # ---- Path A: N-lane-major (small L). Batch is the lane axis, padded to
        # a multiple of 128 -> full 128-lane vreg utilization and lane-dense
        # stores even though l_out = L-3 is never 128-aligned.
        x_t = x2d.T                                                   # (L, N)
        lanes, tile, nblk = _plan(n, 128, 4 * (l + l_out))
        if lanes != n:
            x_t = jnp.pad(x_t, ((0, 0), (0, lanes - n)))              # zero lanes -> junk cols, sliced off
        out_t = pl.pallas_call(
            _make_kernel(l_out, shift_axis=0),
            out_shape=jax.ShapeDtypeStruct((l_out, lanes), jnp.float32),
            grid=(nblk,),
            in_specs=[
                pl.BlockSpec((l, tile), lambda i: (0, i)),            # x lane-tile (VMEM)
                smem_spec,                                            # folded weights
                smem_spec,                                            # folded bias
            ],
            out_specs=pl.BlockSpec((l_out, tile), lambda i: (0, i)),
            compiler_params=compiler_params,
        )(x_t, w_eff, b_eff)
        out2d = out_t[:, :n].T                                        # (N, l_out)
    else:
        # ---- Path B: L-lane-major (large L). Pad the output width to a
        # multiple of 128 (lane-dense stores) and the input width 128 further
        # so the shifted taps (k <= 3) never overrun; slice back in wrapper.
        w_out = _round_up(l_out, 128)
        w_in = w_out + 128
        rows, tile, nblk = _plan(n, 8, 4 * (w_in + w_out))
        xp = jnp.pad(x2d, ((0, rows - n), (0, w_in - l)))
        outp = pl.pallas_call(
            _make_kernel(w_out, shift_axis=1),
            out_shape=jax.ShapeDtypeStruct((rows, w_out), jnp.float32),
            grid=(nblk,),
            in_specs=[
                pl.BlockSpec((tile, w_in), lambda i: (i, 0)),         # x row-tile (VMEM)
                smem_spec,
                smem_spec,
            ],
            out_specs=pl.BlockSpec((tile, w_out), lambda i: (i, 0)),
            compiler_params=compiler_params,
        )(xp, w_eff, b_eff)
        out2d = outp[:n, :l_out]
        # TODO(synk): extremely long L (a single padded row not fitting VMEM)
        # would additionally need an overlapped L-tiling (halo); not needed here.

    return out2d.reshape(n, 1, l_out)


def _reference(x, weights, biases):
    """Pure-JAX reference mirroring the PyTorch forward exactly (unfolded)."""
    n, _, l = x.shape
    l_out = l - (KSIZE - 1)
    xs = x[:, 0, :].astype(jnp.float32)

    def conv(c):
        acc = jnp.zeros((n, l_out), jnp.float32)
        for k in range(KSIZE):
            acc = acc + weights[c, k] * xs[:, k:k + l_out]
        return acc + biases[c]

    x1, x2, x3, x4 = conv(0), conv(1), conv(2), conv(3)
    y1 = x1 + x2
    y2 = y1 + x3
    y3 = y1 + x4
    y3 = y3 + 1.3
    y4 = y1 + y2
    return (y4 + y3)[:, None, :]


def _check(x, weights, biases, tag):
    out = jax.block_until_ready(nasty_adder(x, weights, biases))
    ref = _reference(x, weights, biases)
    n, _, l = x.shape
    assert out.shape == (n, 1, l - (KSIZE - 1)), (tag, out.shape)
    assert jnp.allclose(out, ref, atol=1e-4, rtol=1e-5), f"mismatch vs reference ({tag})"


if __name__ == "__main__":
    key = jax.random.PRNGKey(0)
    k_w, k_b, k1, k2, k3 = jax.random.split(key, 5)

    # Deterministic params mimicking PyTorch Conv1d default init:
    # uniform(-1/sqrt(fan_in), 1/sqrt(fan_in)), fan_in = in_ch * ksize = 4 -> 0.5
    bound = 0.5
    weights = jax.random.uniform(k_w, (4, KSIZE), jnp.float32, -bound, bound)
    biases = jax.random.uniform(k_b, (4,), jnp.float32, -bound, bound)

    # Primary small case implied by the module: (N, 1, L) = (2, 1, 16).  Path A, 1 block.
    _check(jax.random.normal(k1, (2, 1, 16), jnp.float32), weights, biases, "small")

    # Path A with multiple lane blocks (N padded to 256, grid split in 2).
    _check(jax.random.normal(k2, (200, 1, 40), jnp.float32), weights, biases, "lane-tiled")

    # Path B (large L): lane-dense padded output + row-tiled grid (2 blocks).
    _check(jax.random.normal(k3, (16, 1, 384), jnp.float32), weights, biases, "row-tiled")

    print("KERNEL_OK")
</pallas_src>

<mosaic_0001>
module attributes {stable_mosaic.version = 11 : i64} {
  func.func @kernel(%arg0: i32, %arg1: memref<16x128xf32, #tpu.memory_space<vmem>>, %arg2: memref<4xf32, #tpu.memory_space<smem>>, %arg3: memref<1xf32, #tpu.memory_space<smem>>, %arg4: memref<13x128xf32, #tpu.memory_space<vmem>>) attributes {dimension_semantics = [#tpu.dimension_semantics<parallel>], iteration_bounds = array<i64: 1>, scalar_prefetch = 0 : i64, scratch_operands = 0 : i64, tpu.core_type = #tpu.core_type<tc>, window_params = [{transform_indices = @transform_0, window_bounds = array<i64: 16, 128>}, {transform_indices = @transform_1, window_bounds = array<i64: 4>}, {transform_indices = @transform_2, window_bounds = array<i64: 1>}, {transform_indices = @transform_3, window_bounds = array<i64: 13, 128>}]} {
    %c0 = arith.constant 0 : index
    %c0_0 = arith.constant 0 : index
    %0 = vector.load %arg1[%c0, %c0_0] : memref<16x128xf32, #tpu.memory_space<vmem>>, vector<16x128xf32>
    %1 = vector.extract_strided_slice %0 {offsets = [0, 0], sizes = [13, 128], strides = [1, 1]} : vector<16x128xf32> to vector<13x128xf32>
    %2 = vector.extract_strided_slice %0 {offsets = [1, 0], sizes = [13, 128], strides = [1, 1]} : vector<16x128xf32> to vector<13x128xf32>
    %3 = vector.extract_strided_slice %0 {offsets = [2, 0], sizes = [13, 128], strides = [1, 1]} : vector<16x128xf32> to vector<13x128xf32>
    %4 = vector.extract_strided_slice %0 {offsets = [3, 0], sizes = [13, 128], strides = [1, 1]} : vector<16x128xf32> to vector<13x128xf32>
    %c0_1 = arith.constant 0 : index
    %5 = memref.load %arg2[%c0_1] : memref<4xf32, #tpu.memory_space<smem>>
    %6 = vector.broadcast %5 : f32 to vector<13x128xf32>
    %7 = arith.mulf %6, %1 : vector<13x128xf32>
    %c0_2 = arith.constant 0 : index
    %8 = memref.load %arg3[%c0_2] : memref<1xf32, #tpu.memory_space<smem>>
    %9 = vector.broadcast %8 : f32 to vector<13x128xf32>
    %10 = arith.addf %7, %9 : vector<13x128xf32>
    %c1 = arith.constant 1 : index
    %11 = memref.load %arg2[%c1] : memref<4xf32, #tpu.memory_space<smem>>
    %12 = vector.broadcast %11 : f32 to vector<13x128xf32>
    %13 = arith.mulf %12, %2 : vector<13x128xf32>
    %14 = arith.addf %10, %13 : vector<13x128xf32>
    %c2 = arith.constant 2 : index
    %15 = memref.load %arg2[%c2] : memref<4xf32, #tpu.memory_space<smem>>
    %16 = vector.broadcast %15 : f32 to vector<13x128xf32>
    %17 = arith.mulf %16, %3 : vector<13x128xf32>
    %18 = arith.addf %14, %17 : vector<13x128xf32>
    %c3 = arith.constant 3 : index
    %19 = memref.load %arg2[%c3] : memref<4xf32, #tpu.memory_space<smem>>
    %20 = vector.broadcast %19 : f32 to vector<13x128xf32>
    %21 = arith.mulf %20, %4 : vector<13x128xf32>
    %22 = arith.addf %18, %21 : vector<13x128xf32>
    %c0_3 = arith.constant 0 : index
    %c0_4 = arith.constant 0 : index
    %23 = vector.load %arg4[%c0_3, %c0_4] : memref<13x128xf32, #tpu.memory_space<vmem>>, vector<13x128xf32>
    tpu.vector_store %arg4[%c0_3, %c0_4], %22 {strides = array<i32>} : memref<13x128xf32, #tpu.memory_space<vmem>>, vector<13x128xf32>,
    return
  }
  func.func @transform_0(%arg0: i32) -> (i32, i32) {
    %c0_i32 = arith.constant 0 : i32
    %c0_i32_0 = arith.constant 0 : i32
    return %c0_i32, %arg0 : i32, i32
  }
  func.func @transform_1(%arg0: i32) -> i32 {
    %c0_i32 = arith.constant 0 : i32
    %c0_i32_0 = arith.constant 0 : i32
    return %c0_i32 : i32
  }
  func.func @transform_2(%arg0: i32) -> i32 {
    %c0_i32 = arith.constant 0 : i32
    %c0_i32_0 = arith.constant 0 : i32
    return %c0_i32 : i32
  }
  func.func @transform_3(%arg0: i32) -> (i32, i32) {
    %c0_i32 = arith.constant 0 : i32
    %c0_i32_0 = arith.constant 0 : i32
    return %c0_i32, %arg0 : i32, i32
  }
}

</mosaic_0001>

<llo_original>
// kernel: tpu_custom_call.1
$region0: #{tpu_custom_call.1}
  #allocation0 [shape = 'u32[]', space=smem, size = 0x4, offset = 0x4, fixed_abs, tag = 'smem constant byte address 0x4 - core index']
  #allocation1 [shape = 'u32[144,128]{1,0:T(1,128)}', space=vmem, size = 0x12000, scoped, tag = 'internal scratch']
  #allocation2 [shape = 'f32[1]{0:T(128)S(6)}', space=smem, size = 0x200, scoped, tag = 'scoped memory for tpu_custom_call.1']
  %s0 = inlined_call_operand.hbm [shape: f32[16,128], index: 0, kind: input, shape index: {}]
  %s1 = inlined_call_operand.vmem [shape: f32[4], index: 1, kind: input, shape index: {}]
  %s2 = inlined_call_operand.<no memory space> [shape: f32[1], index: 2, kind: input, shape index: {}]
  %s3 = inlined_call_operand.hbm [shape: f32[13,128], index: 3, kind: output, shape index: {}]
  %s4 = sld [smem:[#allocation0]]
  $region30: #{tpu_custom_call.1} parent=0
    _
  %s6 = ssub.s32 1, %s4
  %s7 = scalar_select 0, %s6, %s4
  %8 = sst [smem:[#allocation2]] %s2
  $region1: #{tpu_custom_call.1} parent=0
    #allocation3 [shape = 'u8[8192]{0}', space=vmem, size = 0x2000, scoped, tag = 'input window, operand 0, single buffered']
    #allocation4 [shape = 's32[1]{0}', space=sflag, size = 0x4, scoped, tag = 'scoped memory for tpu_custom_call.1']
    #allocation5 [shape = 's32[1]{0}', space=sflag, size = 0x4, scoped, tag = 'scoped memory for tpu_custom_call.1']
    #allocation6 [shape = 's32[1]{0}', space=sflag, size = 0x4, scoped, tag = 'scoped memory for tpu_custom_call.1']
    #allocation7 [shape = 'u8[512]{0}', space=smem, size = 0x200, scoped, tag = 'input window, operand 1, single buffered']
    #allocation8 [shape = 'u8[8192]{0}', space=vmem, size = 0x2000, scoped, tag = 'output window, operand 0, single buffered']
    %9 = vsyncpa [#allocation4], 0
    %10 = vsyncpa [#allocation6], 0
    %11 = vsyncpa [#allocation5], 0
    // Predicated region
    $region2: #{tpu_custom_call.1} parent=1 // pred_check
      _
    $region3: #{tpu_custom_call.1} parent=1 // pred_check_branch
      %13 = sbr.rel (0) target = $region5
    $region4: #{tpu_custom_call.1} parent=1 // pred_region
      %s15 = ssub.s32 256, 256
      %16 = vsyncadd [#allocation4], %s15
      %s17 = sshll.u32 [#allocation3], 4
      %s18 = int_to_ptr.vmem [resolvable:$true] %s17
      %23 = dma.hbm_to_vmem [thread:$0]  %s0, 256, %s18, [#allocation4], 128, 128, 8
    $region5: #{tpu_custom_call.1} parent=1 // pred_fallthru
      _
    // Predicated region
    $region6: #{tpu_custom_call.1} parent=1 // pred_check
      _
    $region7: #{tpu_custom_call.1} parent=1 // pred_check_branch
      %25 = sbr.rel (0) target = $region9
    $region8: #{tpu_custom_call.1} parent=1 // pred_region
      %s27 = ssub.s32 16, 16
      %28 = vsyncadd [#allocation6], %s27
      %s30 = sshll.u32 %s1, 4
      %s31 = int_to_ptr.vmem [resolvable:$true] %s30
      %33 = dma.vmem_to_smem %s31, 16, [#allocation7], [#allocation6]
    $region9: #{tpu_custom_call.1} parent=1 // pred_fallthru
      _
    // Predicated region
    $region10: #{tpu_custom_call.1} parent=1 // pred_check
      _
    $region11: #{tpu_custom_call.1} parent=1 // pred_check_branch
      %35 = sbr.rel (0) target = $region13
    $region12: #{tpu_custom_call.1} parent=1 // pred_region
      _
    $region13: #{tpu_custom_call.1} parent=1 // pred_fallthru
      _
    // Predicated region
    $region14: #{tpu_custom_call.1} parent=1 // pred_check
      _
    $region15: #{tpu_custom_call.1} parent=1 // pred_check_branch
      %37 = sbr.rel (0) target = $region17
    $region16: #{tpu_custom_call.1} parent=1 // pred_region
      %38 = dma.done [#allocation4], 256
    $region17: #{tpu_custom_call.1} parent=1 // pred_fallthru
      _
    // Predicated region
    $region18: #{tpu_custom_call.1} parent=1 // pred_check
      _
    $region19: #{tpu_custom_call.1} parent=1 // pred_check_branch
      %40 = sbr.rel (0) target = $region21
    $region20: #{tpu_custom_call.1} parent=1 // pred_region
      %41 = dma.done [#allocation6], 16
    $region21: #{tpu_custom_call.1} parent=1 // pred_fallthru
      _
    %42 = sfence
    %v43 = vld [vmem:[#allocation3] sm:$0xff]
    %v44 = vld [vmem:[#allocation3 + $0x8] sm:$0xff]
    %s45 = sld [smem:[#allocation7]]
    %v46 = vstv %s45
    %v47 = vmul.f32 %v46, %v43
    %v48 = vmul.f32 %v46, %v44
    %s49 = sld [smem:[#allocation2]]
    %v50 = vstv %s49
    %v51 = vadd.f32 %v47, %v50
    %v52 = vadd.f32 %v48, %v50
    %s53 = sld [smem:[#allocation7 + $0x1]]
    %v54 = vstv %s53
    %v55 = vmul.f32 %v54, %v43
    %v56 = vmul.f32 %v54, %v44
    %vm59 = vcmask 1046528
    %v60 = vrot.slane %v55, 1
    %v61 = vrot.slane %v56, 1
    %v62 = vsel %vm59, %v60, %v61
    %v65 = vadd.f32 %v51, %v62
    %v66 = vadd.f32 %v52, %v61
    %s67 = sld [smem:[#allocation7 + $0x2]]
    %v68 = vstv %s67
    %v69 = vmul.f32 %v68, %v43
    %v70 = vmul.f32 %v68, %v44
    %vm73 = vcmask 1045504
    %v74 = vrot.slane %v69, 2
    %v75 = vrot.slane %v70, 2
    %v76 = vsel %vm73, %v74, %v75
    %v79 = vadd.f32 %v65, %v76
    %v80 = vadd.f32 %v66, %v75
    %s81 = sld [smem:[#allocation7 + $0x3]]
    %v82 = vstv %s81
    %v83 = vmul.f32 %v82, %v43
    %v84 = vmul.f32 %v82, %v44
    %vm87 = vcmask 1044480
    %v88 = vrot.slane %v83, 3
    %v89 = vrot.slane %v84, 3
    %v90 = vsel %vm87, %v88, %v89
    %v93 = vadd.f32 %v79, %v90
    %v94 = vadd.f32 %v80, %v89
    %95 = vst [vmem:[#allocation8] sm:$0xff] %v93
    %96 = vst [vmem:[#allocation8 + $0x8] sm:$0x1f] %v94
    // Predicated region
    $region22: #{tpu_custom_call.1} parent=1 // pred_check
      _
    $region23: #{tpu_custom_call.1} parent=1 // pred_check_branch
      %98 = sbr.rel (0) target = $region25
    $region24: #{tpu_custom_call.1} parent=1 // pred_region
      %s100 = ssub.s32 256, 256
      %101 = vsyncadd [#allocation5], %s100
      %s102 = sshll.u32 [#allocation8], 4
      %s103 = int_to_ptr.vmem [resolvable:$true] %s102
      %108 = dma.vmem_to_hbm [thread:$0]  %s103, 256, %s3, [#allocation5], 128, 128, 8
    $region25: #{tpu_custom_call.1} parent=1 // pred_fallthru
      _
    // Predicated region
    $region26: #{tpu_custom_call.1} parent=1 // pred_check
      _
    $region27: #{tpu_custom_call.1} parent=1 // pred_check_branch
      %110 = sbr.rel (0) target = $region29
    $region28: #{tpu_custom_call.1} parent=1 // pred_region
      %111 = dma.done [#allocation5], 256
    $region29: #{tpu_custom_call.1} parent=1 // pred_fallthru
      _
    %112 = vsyncpa [#allocation4], 1
    %113 = vsyncpa [#allocation5], 1
    %114 = vsyncpa [#allocation6], 1

</llo_original>
